<compile_context>
chip_gen: v7x
topology: tpu7x:2x2x1
jax: 0.10.0
libtpu: 0.0.40
codegen_flags: <defaults>
</compile_context>

<pallas_src>
import jax
import jax.numpy as jnp
from jax.experimental import pallas as pl
from jax.experimental.pallas import tpu as pltpu

_IN_DIM = 512     # fc1 input width (fixed by the module)
_OUT_PAD = 128    # lane-dense padding for the 2-wide fc3 weight (clean MXU tile)


def _rnn_seq_kernel(x_ref, state0_ref, w12_ref, b12_ref, w3_ref, b3_ref,
                    out_ref, state_out_ref, state_vmem):
    """One time-step per grid iteration; weights stay VMEM-resident."""
    t = pl.program_id(0)

    # Prime the f32 recurrent carry from the initial state (DMA'd once).
    @pl.when(t == 0)
    def _():
        state_vmem[...] = state0_ref[...]

    x = x_ref[0]                        # (B, 512) bf16 (pre-cast wrapper-side)
    st = state_vmem[...]                # (B, ndims) f32 carry

    # Fused fc1 + fc2 as two accumulating dots on static slices of w12
    # (no per-step concat copy; second dot accumulates in the MRB on v7x).
    pre = jnp.dot(x, w12_ref[:_IN_DIM, :], preferred_element_type=jnp.float32)
    pre = pre + jnp.dot(st.astype(w12_ref.dtype), w12_ref[_IN_DIM:, :],
                        preferred_element_type=jnp.float32)
    pre = pre + b12_ref[...]            # bias add in f32 (v5e-safe)
    new_state = jnp.maximum(pre, 0.0)   # relu in f32
    state_vmem[...] = new_state         # keep the recurrent carry in f32

    # fc3 against the lane-dense padded weight (clean N=128 MXU tile); only the
    # 2 real lanes are stored -> 64 B/step of HBM output, no padding writes.
    o_full = jnp.dot(new_state.astype(w3_ref.dtype), w3_ref[...],
                     preferred_element_type=jnp.float32) + b3_ref[...]
    out_ref[0, :, :] = o_full[:, :2].astype(out_ref.dtype)

    # Final state: written back to HBM exactly once, at the last step.
    @pl.when(t == pl.num_programs(0) - 1)
    def _():
        state_out_ref[...] = new_state.astype(state_out_ref.dtype)


def init_params(key, ndims):
    """Deterministic parameter init mirroring nn.Linear (out, in) shapes."""
    ks = jax.random.split(key, 6)

    def linear(kw, kb, fan_in, fan_out):
        bound = 1.0 / jnp.sqrt(fan_in)
        w = jax.random.uniform(kw, (fan_out, fan_in), jnp.float32, -bound, bound)
        b = jax.random.uniform(kb, (fan_out,), jnp.float32, -bound, bound)
        return w, b

    w1, b1 = linear(ks[0], ks[1], _IN_DIM, ndims)   # fc1
    w2, b2 = linear(ks[2], ks[3], ndims, ndims)     # fc2
    w3, b3 = linear(ks[4], ks[5], ndims, 2)         # fc3
    return (w1, b1, w2, b2, w3, b3)


def prepare_params(params, weight_dtype=jnp.bfloat16):
    """One-time param prep: transpose, fuse fc1/fc2, pad fc3 lane-dense, cast."""
    w1, b1, w2, b2, w3, b3 = params
    ndims = w1.shape[0]
    # Fused fc1/fc2 weight: (512 + ndims, ndims), stored bf16.
    w12 = jnp.concatenate([w1.T, w2.T], axis=0).astype(weight_dtype)
    b12 = (b1 + b2).reshape(1, ndims).astype(jnp.float32)
    # fc3 zero-padded to 128 output lanes (MXU-friendly; DMA'd once).
    w3p = jnp.zeros((ndims, _OUT_PAD), weight_dtype).at[:, :2].set(
        w3.T.astype(weight_dtype))
    b3p = jnp.zeros((1, _OUT_PAD), jnp.float32).at[:, :2].set(
        b3.astype(jnp.float32))
    return (w12, b12, w3p, b3p)


@jax.jit
def rnn_sequence_forward(x_seq, state0, prepared):
    """x_seq: (T, B, 512), state0: (B, ndims) f32
       -> (outputs (T, B, 2) f32, final_state (B, ndims) f32)."""
    w12, b12, w3p, b3p = prepared
    T, B, in_dim = x_seq.shape
    ndims = state0.shape[1]

    # Pre-cast the streamed input once (halves the per-step HBM read).
    x_seq = x_seq.astype(w12.dtype)
    state0 = state0.astype(jnp.float32)

    flops = T * (2 * B * (in_dim + ndims) * ndims + 2 * B * ndims * _OUT_PAD)
    bytes_accessed = (
        x_seq.size * x_seq.dtype.itemsize
        + state0.size * 4
        + w12.size * w12.dtype.itemsize + b12.size * 4
        + w3p.size * w3p.dtype.itemsize + b3p.size * 4
        + T * B * 2 * 4            # streamed (T, B, 2) outputs
        + B * ndims * 4            # final state
    )

    outs, final_state = pl.pallas_call(
        _rnn_seq_kernel,
        out_shape=(
            jax.ShapeDtypeStruct((T, B, 2), jnp.float32),
            jax.ShapeDtypeStruct((B, ndims), jnp.float32),
        ),
        grid_spec=pltpu.PrefetchScalarGridSpec(
            num_scalar_prefetch=0,
            grid=(T,),
            in_specs=[
                pl.BlockSpec((1, B, in_dim), lambda t: (t, 0, 0)),        # x[t]
                pl.BlockSpec((B, ndims), lambda t: (0, 0)),               # state0
                pl.BlockSpec((in_dim + ndims, ndims), lambda t: (0, 0)),  # w12
                pl.BlockSpec((1, ndims), lambda t: (0, 0)),               # b12
                pl.BlockSpec((ndims, _OUT_PAD), lambda t: (0, 0)),        # w3p
                pl.BlockSpec((1, _OUT_PAD), lambda t: (0, 0)),            # b3p
            ],
            out_specs=[
                pl.BlockSpec((1, B, 2), lambda t: (t, 0, 0)),             # outputs
                pl.BlockSpec((B, ndims), lambda t: (0, 0)),               # final state
            ],
            scratch_shapes=[pltpu.VMEM((B, ndims), jnp.float32)],         # f32 carry
        ),
        compiler_params=pltpu.CompilerParams(
            dimension_semantics=("arbitrary",)),   # recurrence is serial
        cost_estimate=pl.CostEstimate(
            flops=flops, transcendentals=0, bytes_accessed=bytes_accessed),
    )(x_seq, state0, w12, b12, w3p, b3p)

    return outs, final_state


def rnn_single_forward(x, state, prepared):
    """Exact per-step semantics of rnn_single.forward:
       (x (B, 512), state (B, ndims)) -> (output (B, 2), new_state (B, ndims))."""
    outs, new_state = rnn_sequence_forward(x[None], state, prepared)
    return outs[0], new_state


if __name__ == "__main__":
    key = jax.random.PRNGKey(0)
    k_p, k_x, k_s, k_seq = jax.random.split(key, 4)

    B = 8          # batch
    NDIMS = 128    # hidden size
    T = 8          # sequence length for the looped kernel

    params = init_params(k_p, NDIMS)
    prepared = prepare_params(params)   # one-time: transpose/fuse/pad/bf16
    w1, b1, w2, b2, w3, b3 = params

    # ---- single-step check (matches the module's forward signature) ----
    x = jax.random.normal(k_x, (B, _IN_DIM), jnp.float32)
    state = 0.1 * jax.random.normal(k_s, (B, NDIMS), jnp.float32)
    out1, ns1 = rnn_single_forward(x, state, prepared)
    jax.block_until_ready((out1, ns1))

    h_ref = x @ w1.T + b1
    s_ref = state @ w2.T + b2
    ns_ref = jnp.maximum(h_ref + s_ref, 0.0)
    out_ref = ns_ref @ w3.T + b3
    assert out1.shape == (B, 2) and ns1.shape == (B, NDIMS)
    assert jnp.allclose(out1, out_ref, atol=2e-2, rtol=2e-2)
    assert jnp.allclose(ns1, ns_ref, atol=2e-2, rtol=2e-2)

    # ---- sequence check (time loop internalized in one pallas_call) ----
    x_seq = jax.random.normal(k_seq, (T, B, _IN_DIM), jnp.float32)
    state0 = jnp.zeros((B, NDIMS), jnp.float32)        # init_hidden
    outs, final_state = rnn_sequence_forward(x_seq, state0, prepared)
    jax.block_until_ready((outs, final_state))
    assert outs.shape == (T, B, 2) and final_state.shape == (B, NDIMS)

    # f32 reference of the PyTorch math, unrolled over time (loose tolerance:
    # deliberate bf16-weight / f32-accumulate trade documented above).
    st = state0
    outs_f32 = []
    for t in range(T):
        h = x_seq[t] @ w1.T + b1
        s = st @ w2.T + b2
        st = jnp.maximum(h + s, 0.0)
        outs_f32.append(st @ w3.T + b3)
    outs_f32 = jnp.stack(outs_f32)
    assert jnp.allclose(outs, outs_f32, atol=5e-2, rtol=5e-2)
    assert jnp.allclose(final_state, st, atol=5e-2, rtol=5e-2)

    # Matched-precision reference (same bf16 weights / f32-accumulate recipe).
    w12, b12, w3p, b3p = prepared
    stm = state0
    outs_m = []
    for t in range(T):
        pre = jnp.dot(x_seq[t].astype(w12.dtype), w12[:_IN_DIM],
                      preferred_element_type=jnp.float32)
        pre = pre + jnp.dot(stm.astype(w12.dtype), w12[_IN_DIM:],
                            preferred_element_type=jnp.float32) + b12
        stm = jnp.maximum(pre, 0.0)
        om = jnp.dot(stm.astype(w3p.dtype), w3p,
                     preferred_element_type=jnp.float32) + b3p
        outs_m.append(om[:, :2])
    outs_m = jnp.stack(outs_m)
    assert jnp.allclose(outs, outs_m, atol=1e-2, rtol=1e-2)
    assert jnp.allclose(final_state, stm, atol=1e-2, rtol=1e-2)

    print("KERNEL_OK")
</pallas_src>

<mosaic_0001>
module attributes {stable_mosaic.version = 11 : i64} {
  func.func @_rnn_seq_kernel(%arg0: i32, %arg1: memref<1x8x512xbf16, #tpu.memory_space<vmem>>, %arg2: memref<8x128xf32, #tpu.memory_space<vmem>>, %arg3: memref<640x128xbf16, #tpu.memory_space<vmem>>, %arg4: memref<1x128xf32, #tpu.memory_space<vmem>>, %arg5: memref<128x128xbf16, #tpu.memory_space<vmem>>, %arg6: memref<1x128xf32, #tpu.memory_space<vmem>>, %arg7: memref<1x8x2xf32, #tpu.memory_space<vmem>>, %arg8: memref<8x128xf32, #tpu.memory_space<vmem>>, %arg9: memref<8x128xf32, #tpu.memory_space<vmem>>) attributes {dimension_semantics = [#tpu.dimension_semantics<arbitrary>], iteration_bounds = array<i64: 1>, scalar_prefetch = 0 : i64, scratch_operands = 1 : i64, tpu.core_type = #tpu.core_type<tc>, window_params = [{transform_indices = @transform_0, window_bounds = array<i64: 1, 8, 512>}, {pipeline_mode = #tpu.pipeline_mode<synchronous>, transform_indices = @transform_1, window_bounds = array<i64: 8, 128>}, {pipeline_mode = #tpu.pipeline_mode<synchronous>, transform_indices = @transform_2, window_bounds = array<i64: 640, 128>}, {pipeline_mode = #tpu.pipeline_mode<synchronous>, transform_indices = @transform_3, window_bounds = array<i64: 1, 128>}, {pipeline_mode = #tpu.pipeline_mode<synchronous>, transform_indices = @transform_4, window_bounds = array<i64: 128, 128>}, {pipeline_mode = #tpu.pipeline_mode<synchronous>, transform_indices = @transform_5, window_bounds = array<i64: 1, 128>}, {transform_indices = @transform_6, window_bounds = array<i64: 1, 8, 2>}, {pipeline_mode = #tpu.pipeline_mode<synchronous>, transform_indices = @transform_7, window_bounds = array<i64: 8, 128>}]} {
    %c0_i32 = arith.constant 0 : i32
    %0 = arith.cmpi eq, %arg0, %c0_i32 : i32
    %1 = arith.extui %0 : i1 to i32
    %c0_i32_0 = arith.constant 0 : i32
    %2 = arith.cmpi ne, %1, %c0_i32_0 : i32
    scf.if %2 {
      %c0_24 = arith.constant 0 : index
      %c0_25 = arith.constant 0 : index
      %31 = vector.load %arg2[%c0_24, %c0_25] : memref<8x128xf32, #tpu.memory_space<vmem>>, vector<8x128xf32>
      %c0_26 = arith.constant 0 : index
      %c0_27 = arith.constant 0 : index
      %32 = vector.load %arg9[%c0_26, %c0_27] : memref<8x128xf32, #tpu.memory_space<vmem>>, vector<8x128xf32>
      tpu.vector_store %arg9[%c0_26, %c0_27], %31 {strides = array<i32>} : memref<8x128xf32, #tpu.memory_space<vmem>>, vector<8x128xf32>,
    } else {
    }
    %c0 = arith.constant 0 : index
    %c0_1 = arith.constant 0 : index
    %c0_2 = arith.constant 0 : index
    %3 = vector.load %arg1[%c0, %c0_1, %c0_2] : memref<1x8x512xbf16, #tpu.memory_space<vmem>>, vector<1x8x512xbf16>
    %4 = vector.shape_cast %3 : vector<1x8x512xbf16> to vector<8x512xbf16>
    %c0_3 = arith.constant 0 : index
    %c0_4 = arith.constant 0 : index
    %5 = vector.load %arg9[%c0_3, %c0_4] : memref<8x128xf32, #tpu.memory_space<vmem>>, vector<8x128xf32>
    %c0_5 = arith.constant 0 : index
    %c0_6 = arith.constant 0 : index
    %6 = vector.load %arg3[%c0_5, %c0_6] : memref<640x128xbf16, #tpu.memory_space<vmem>>, vector<512x128xbf16>
    %cst = arith.constant dense<0.000000e+00> : vector<8x128xf32>
    %7 = tpu.matmul %4, %6, %cst {dimension_numbers = #tpu.dot_dimension_numbers<[1], [0], [0], [1], [0, 0, 1, 1], [], []>} : vector<8x512xbf16>, vector<512x128xbf16>, vector<8x128xf32> -> vector<8x128xf32>
    %8 = arith.truncf %5 : vector<8x128xf32> to vector<8x128xbf16>
    %c512 = arith.constant 512 : index
    %c0_7 = arith.constant 0 : index
    %9 = vector.load %arg3[%c512, %c0_7] : memref<640x128xbf16, #tpu.memory_space<vmem>>, vector<128x128xbf16>
    %cst_8 = arith.constant dense<0.000000e+00> : vector<8x128xf32>
    %10 = tpu.matmul %8, %9, %cst_8 {dimension_numbers = #tpu.dot_dimension_numbers<[1], [0], [0], [1], [0, 0, 1, 1], [], []>} : vector<8x128xbf16>, vector<128x128xbf16>, vector<8x128xf32> -> vector<8x128xf32>
    %11 = arith.addf %7, %10 : vector<8x128xf32>
    %c0_9 = arith.constant 0 : index
    %c0_10 = arith.constant 0 : index
    %12 = vector.load %arg4[%c0_9, %c0_10] : memref<1x128xf32, #tpu.memory_space<vmem>>, vector<1x128xf32>
    %13 = vector.broadcast %12 : vector<1x128xf32> to vector<8x128xf32>
    %14 = arith.addf %11, %13 : vector<8x128xf32>
    %cst_11 = arith.constant 0.000000e+00 : f32
    %15 = vector.broadcast %cst_11 : f32 to vector<8x128xf32>
    %16 = arith.maximumf %14, %15 : vector<8x128xf32>
    %c0_12 = arith.constant 0 : index
    %c0_13 = arith.constant 0 : index
    %17 = vector.load %arg9[%c0_12, %c0_13] : memref<8x128xf32, #tpu.memory_space<vmem>>, vector<8x128xf32>
    tpu.vector_store %arg9[%c0_12, %c0_13], %16 {strides = array<i32>} : memref<8x128xf32, #tpu.memory_space<vmem>>, vector<8x128xf32>,
    %18 = arith.truncf %16 : vector<8x128xf32> to vector<8x128xbf16>
    %c0_14 = arith.constant 0 : index
    %c0_15 = arith.constant 0 : index
    %19 = vector.load %arg5[%c0_14, %c0_15] : memref<128x128xbf16, #tpu.memory_space<vmem>>, vector<128x128xbf16>
    %cst_16 = arith.constant dense<0.000000e+00> : vector<8x128xf32>
    %20 = tpu.matmul %18, %19, %cst_16 {dimension_numbers = #tpu.dot_dimension_numbers<[1], [0], [0], [1], [0, 0, 1, 1], [], []>} : vector<8x128xbf16>, vector<128x128xbf16>, vector<8x128xf32> -> vector<8x128xf32>
    %c0_17 = arith.constant 0 : index
    %c0_18 = arith.constant 0 : index
    %21 = vector.load %arg6[%c0_17, %c0_18] : memref<1x128xf32, #tpu.memory_space<vmem>>, vector<1x128xf32>
    %22 = vector.broadcast %21 : vector<1x128xf32> to vector<8x128xf32>
    %23 = arith.addf %20, %22 : vector<8x128xf32>
    %24 = vector.extract_strided_slice %23 {offsets = [0, 0], sizes = [8, 2], strides = [1, 1]} : vector<8x128xf32> to vector<8x2xf32>
    %c0_19 = arith.constant 0 : index
    %c0_20 = arith.constant 0 : index
    %c0_21 = arith.constant 0 : index
    %25 = vector.load %arg7[%c0_19, %c0_20, %c0_21] : memref<1x8x2xf32, #tpu.memory_space<vmem>>, vector<1x8x2xf32>
    %26 = vector.shape_cast %25 : vector<1x8x2xf32> to vector<8x2xf32>
    %27 = vector.shape_cast %24 : vector<8x2xf32> to vector<1x8x2xf32>
    tpu.vector_store %arg7[%c0_19, %c0_20, %c0_21], %27 {strides = array<i32>} : memref<1x8x2xf32, #tpu.memory_space<vmem>>, vector<1x8x2xf32>,
    %c0_i32_22 = arith.constant 0 : i32
    %28 = arith.cmpi eq, %arg0, %c0_i32_22 : i32
    %29 = arith.extui %28 : i1 to i32
    %c0_i32_23 = arith.constant 0 : i32
    %30 = arith.cmpi ne, %29, %c0_i32_23 : i32
    scf.if %30 {
      %c0_24 = arith.constant 0 : index
      %c0_25 = arith.constant 0 : index
      %31 = vector.load %arg8[%c0_24, %c0_25] : memref<8x128xf32, #tpu.memory_space<vmem>>, vector<8x128xf32>
      tpu.vector_store %arg8[%c0_24, %c0_25], %16 {strides = array<i32>} : memref<8x128xf32, #tpu.memory_space<vmem>>, vector<8x128xf32>,
    } else {
    }
    return
  }
  func.func @transform_0(%arg0: i32) -> (i32, i32, i32) {
    %c0_i32 = arith.constant 0 : i32
    %c0_i32_0 = arith.constant 0 : i32
    %c0_i32_1 = arith.constant 0 : i32
    return %arg0, %c0_i32, %c0_i32_0 : i32, i32, i32
  }
  func.func @transform_1(%arg0: i32) -> (i32, i32) {
    %c0_i32 = arith.constant 0 : i32
    %c0_i32_0 = arith.constant 0 : i32
    %c0_i32_1 = arith.constant 0 : i32
    return %c0_i32, %c0_i32_0 : i32, i32
  }
  func.func @transform_2(%arg0: i32) -> (i32, i32) {
    %c0_i32 = arith.constant 0 : i32
    %c0_i32_0 = arith.constant 0 : i32
    %c0_i32_1 = arith.constant 0 : i32
    return %c0_i32, %c0_i32_0 : i32, i32
  }
  func.func @transform_3(%arg0: i32) -> (i32, i32) {
    %c0_i32 = arith.constant 0 : i32
    %c0_i32_0 = arith.constant 0 : i32
    %c0_i32_1 = arith.constant 0 : i32
    return %c0_i32, %c0_i32_0 : i32, i32
  }
  func.func @transform_4(%arg0: i32) -> (i32, i32) {
    %c0_i32 = arith.constant 0 : i32
    %c0_i32_0 = arith.constant 0 : i32
    %c0_i32_1 = arith.constant 0 : i32
    return %c0_i32, %c0_i32_0 : i32, i32
  }
  func.func @transform_5(%arg0: i32) -> (i32, i32) {
    %c0_i32 = arith.constant 0 : i32
    %c0_i32_0 = arith.constant 0 : i32
    %c0_i32_1 = arith.constant 0 : i32
    return %c0_i32, %c0_i32_0 : i32, i32
  }
  func.func @transform_6(%arg0: i32) -> (i32, i32, i32) {
    %c0_i32 = arith.constant 0 : i32
    %c0_i32_0 = arith.constant 0 : i32
    %c0_i32_1 = arith.constant 0 : i32
    return %arg0, %c0_i32, %c0_i32_0 : i32, i32, i32
  }
  func.func @transform_7(%arg0: i32) -> (i32, i32) {
    %c0_i32 = arith.constant 0 : i32
    %c0_i32_0 = arith.constant 0 : i32
    %c0_i32_1 = arith.constant 0 : i32
    return %c0_i32, %c0_i32_0 : i32, i32
  }
}

</mosaic_0001>

<llo_original>
// kernel: rnn_sequence_forward.1
$region0: #{rnn_sequence_forward.1}
  #allocation0 [shape = 'u32[]', space=smem, size = 0x4, offset = 0x4, fixed_abs, tag = 'smem constant byte address 0x4 - core index']
  #allocation1 [shape = 'u32[144,128]{1,0:T(1,128)}', space=vmem, size = 0x12000, scoped, tag = 'internal scratch']
  #allocation2 [shape = 'f32[8,128]{1,0:T(8,128)}', space=vmem, size = 0x1000, scoped, tag = 'scratch operand']
  %s0 = inlined_call_operand.vmem [shape: bf16[1,8,512], index: 0, kind: input, shape index: {}]
  %s1 = inlined_call_operand.vmem [shape: f32[8,128], index: 1, kind: input, shape index: {}]
  %s2 = inlined_call_operand.hbm [shape: bf16[640,128], index: 2, kind: input, shape index: {}]
  %s3 = inlined_call_operand.vmem [shape: f32[1,128], index: 3, kind: input, shape index: {}]
  %s4 = inlined_call_operand.hbm [shape: bf16[128,128], index: 4, kind: input, shape index: {}]
  %s5 = inlined_call_operand.vmem [shape: f32[1,128], index: 5, kind: input, shape index: {}]
  %s6 = inlined_call_operand.vmem [shape: f32[1,8,2], index: 6, kind: output, shape index: {0}]
  %s7 = inlined_call_operand.hbm [shape: f32[8,128], index: 7, kind: output, shape index: {1}]
  %8 = xla_tuple %s6, %s7
  %s9 = sld [smem:[#allocation0]]
  $region58: #{rnn_sequence_forward.1} parent=0
    _
  %s11 = ssub.s32 1, %s9
  %s12 = scalar_select 0, %s11, %s9
  $region1: #{rnn_sequence_forward.1} parent=0
    #allocation3 [shape = 'u8[163840]{0}', space=vmem, size = 0x28000, scoped, tag = 'input window, operand 2, single buffered']
    #allocation4 [shape = 's32[1]{0}', space=sflag, size = 0x4, scoped, tag = 'scoped memory for rnn_sequence_forward.1']
    #allocation5 [shape = 's32[1]{0}', space=sflag, size = 0x4, scoped, tag = 'scoped memory for rnn_sequence_forward.1']
    #allocation6 [shape = 'u8[32768]{0}', space=vmem, size = 0x8000, scoped, tag = 'input window, operand 4, single buffered']
    #allocation7 [shape = 's32[1]{0}', space=sflag, size = 0x4, scoped, tag = 'scoped memory for rnn_sequence_forward.1']
    #allocation8 [shape = 'u8[4096]{0}', space=vmem, size = 0x1000, scoped, tag = 'output window, operand 1, single buffered']
    %13 = vsyncpa [#allocation4], 0
    %14 = vsyncpa [#allocation7], 0
    %15 = vsyncpa [#allocation5], 0
    // Predicated region
    $region2: #{rnn_sequence_forward.1} parent=1 // pred_check
      _
    $region3: #{rnn_sequence_forward.1} parent=1 // pred_check_branch
      %17 = sbr.rel (0) target = $region5
    $region4: #{rnn_sequence_forward.1} parent=1 // pred_region
      _
    $region5: #{rnn_sequence_forward.1} parent=1 // pred_fallthru
      _
    // Predicated region
    $region6: #{rnn_sequence_forward.1} parent=1 // pred_check
      _
    $region7: #{rnn_sequence_forward.1} parent=1 // pred_check_branch
      %19 = sbr.rel (0) target = $region9
    $region8: #{rnn_sequence_forward.1} parent=1 // pred_region
      _
    $region9: #{rnn_sequence_forward.1} parent=1 // pred_fallthru
      _
    // Predicated region
    $region10: #{rnn_sequence_forward.1} parent=1 // pred_check
      _
    $region11: #{rnn_sequence_forward.1} parent=1 // pred_check_branch
      %21 = sbr.rel (0) target = $region13
    $region12: #{rnn_sequence_forward.1} parent=1 // pred_region
      %s23 = ssub.s32 5120, 5120
      %24 = vsyncadd [#allocation4], %s23
      %s25 = sshll.u32 [#allocation3], 4
      %s26 = int_to_ptr.vmem [resolvable:$true] %s25
      %31 = dma.hbm_to_vmem [thread:$0]  %s2, 5120, %s26, [#allocation4], 64, 64, 4
    $region13: #{rnn_sequence_forward.1} parent=1 // pred_fallthru
      _
    // Predicated region
    $region14: #{rnn_sequence_forward.1} parent=1 // pred_check
      _
    $region15: #{rnn_sequence_forward.1} parent=1 // pred_check_branch
      %33 = sbr.rel (0) target = $region17
    $region16: #{rnn_sequence_forward.1} parent=1 // pred_region
      _
    $region17: #{rnn_sequence_forward.1} parent=1 // pred_fallthru
      _
    // Predicated region
    $region18: #{rnn_sequence_forward.1} parent=1 // pred_check
      _
    $region19: #{rnn_sequence_forward.1} parent=1 // pred_check_branch
      %35 = sbr.rel (0) target = $region21
    $region20: #{rnn_sequence_forward.1} parent=1 // pred_region
      %s37 = ssub.s32 1024, 1024
      %38 = vsyncadd [#allocation7], %s37
      %s39 = sshll.u32 [#allocation6], 4
      %s40 = int_to_ptr.vmem [resolvable:$true] %s39
      %45 = dma.hbm_to_vmem [thread:$0]  %s4, 1024, %s40, [#allocation7], 64, 64, 4
    $region21: #{rnn_sequence_forward.1} parent=1 // pred_fallthru
      _
    // Predicated region
    $region22: #{rnn_sequence_forward.1} parent=1 // pred_check
      _
    $region23: #{rnn_sequence_forward.1} parent=1 // pred_check_branch
      %47 = sbr.rel (0) target = $region25
    $region24: #{rnn_sequence_forward.1} parent=1 // pred_region
      _
    $region25: #{rnn_sequence_forward.1} parent=1 // pred_fallthru
      _
    // Predicated region
    $region26: #{rnn_sequence_forward.1} parent=1 // pred_check
      _
    $region27: #{rnn_sequence_forward.1} parent=1 // pred_check_branch
      %49 = sbr.rel (0) target = $region29
    $region28: #{rnn_sequence_forward.1} parent=1 // pred_region
      %50 = dma.done [#allocation4], 5120
    $region29: #{rnn_sequence_forward.1} parent=1 // pred_fallthru
      _
    // Predicated region
    $region30: #{rnn_sequence_forward.1} parent=1 // pred_check
      _
    $region31: #{rnn_sequence_forward.1} parent=1 // pred_check_branch
      %52 = sbr.rel (0) target = $region33
    $region32: #{rnn_sequence_forward.1} parent=1 // pred_region
      %53 = dma.done [#allocation7], 1024
    $region33: #{rnn_sequence_forward.1} parent=1 // pred_fallthru
      _
    %p55 = scmp.eq.s32.totalorder 0, 0
    // Predicated region
    $region34: #{rnn_sequence_forward.1} parent=1 // pred_check
      %p56 = pneg %p55
    $region35: #{rnn_sequence_forward.1} parent=1 // pred_check_branch
      %58 = sbr.rel (%p56) target = $region37
    $region36: #{rnn_sequence_forward.1} parent=1 // pred_region
      %v59 = vld [vmem:[%s1] sm:$0xff]
      %60 = vst [vmem:[#allocation2] sm:$0xff] %v59
    $region37: #{rnn_sequence_forward.1} parent=1 // pred_fallthru
      _
    %v61 = vld [vmem:[%s0] sm:$0xff]
    %v62 = vld [vmem:[%s0 + $0x8] sm:$0xff]
    %v63 = vld [vmem:[#allocation2] sm:$0xff]
    %v64 = vld [vmem:[#allocation3] sm:$0xf]
    %v65 = vld [vmem:[#allocation3 + $0x4] sm:$0xf]
    %v66 = vld [vmem:[#allocation3 + $0x8] sm:$0xf]
    %v67 = vld [vmem:[#allocation3 + $0xc] sm:$0xf]
    %v68 = vld [vmem:[#allocation3 + $0x10] sm:$0xf]
    %v69 = vld [vmem:[#allocation3 + $0x14] sm:$0xf]
    %v70 = vld [vmem:[#allocation3 + $0x18] sm:$0xf]
    %v71 = vld [vmem:[#allocation3 + $0x1c] sm:$0xf]
    %v72 = vld [vmem:[#allocation3 + $0x20] sm:$0xf]
    %v73 = vld [vmem:[#allocation3 + $0x24] sm:$0xf]
    %v74 = vld [vmem:[#allocation3 + $0x28] sm:$0xf]
    %v75 = vld [vmem:[#allocation3 + $0x2c] sm:$0xf]
    %v76 = vld [vmem:[#allocation3 + $0x30] sm:$0xf]
    %v77 = vld [vmem:[#allocation3 + $0x34] sm:$0xf]
    %v78 = vld [vmem:[#allocation3 + $0x38] sm:$0xf]
    %v79 = vld [vmem:[#allocation3 + $0x3c] sm:$0xf]
    %v80 = vld [vmem:[#allocation3 + $0x40] sm:$0xf]
    %v81 = vld [vmem:[#allocation3 + $0x44] sm:$0xf]
    %v82 = vld [vmem:[#allocation3 + $0x48] sm:$0xf]
    %v83 = vld [vmem:[#allocation3 + $0x4c] sm:$0xf]
    %v84 = vld [vmem:[#allocation3 + $0x50] sm:$0xf]
    %v85 = vld [vmem:[#allocation3 + $0x54] sm:$0xf]
    %v86 = vld [vmem:[#allocation3 + $0x58] sm:$0xf]
    %v87 = vld [vmem:[#allocation3 + $0x5c] sm:$0xf]
    %v88 = vld [vmem:[#allocation3 + $0x60] sm:$0xf]
    %v89 = vld [vmem:[#allocation3 + $0x64] sm:$0xf]
    %v90 = vld [vmem:[#allocation3 + $0x68] sm:$0xf]
    %v91 = vld [vmem:[#allocation3 + $0x6c] sm:$0xf]
    %v92 = vld [vmem:[#allocation3 + $0x70] sm:$0xf]
    %v93 = vld [vmem:[#allocation3 + $0x74] sm:$0xf]
    %v94 = vld [vmem:[#allocation3 + $0x78] sm:$0xf]
    %v95 = vld [vmem:[#allocation3 + $0x7c] sm:$0xf]
    %v96 = vld [vmem:[#allocation3 + $0x80] sm:$0xf]
    %v97 = vld [vmem:[#allocation3 + $0x84] sm:$0xf]
    %v98 = vld [vmem:[#allocation3 + $0x88] sm:$0xf]
    %v99 = vld [vmem:[#allocation3 + $0x8c] sm:$0xf]
    %v100 = vld [vmem:[#allocation3 + $0x90] sm:$0xf]
    %v101 = vld [vmem:[#allocation3 + $0x94] sm:$0xf]
    %v102 = vld [vmem:[#allocation3 + $0x98] sm:$0xf]
    %v103 = vld [vmem:[#allocation3 + $0x9c] sm:$0xf]
    %v104 = vld [vmem:[#allocation3 + $0xa0] sm:$0xf]
    %v105 = vld [vmem:[#allocation3 + $0xa4] sm:$0xf]
    %v106 = vld [vmem:[#allocation3 + $0xa8] sm:$0xf]
    %v107 = vld [vmem:[#allocation3 + $0xac] sm:$0xf]
    %v108 = vld [vmem:[#allocation3 + $0xb0] sm:$0xf]
    %v109 = vld [vmem:[#allocation3 + $0xb4] sm:$0xf]
    %v110 = vld [vmem:[#allocation3 + $0xb8] sm:$0xf]
    %v111 = vld [vmem:[#allocation3 + $0xbc] sm:$0xf]
    %v112 = vld [vmem:[#allocation3 + $0xc0] sm:$0xf]
    %v113 = vld [vmem:[#allocation3 + $0xc4] sm:$0xf]
    %v114 = vld [vmem:[#allocation3 + $0xc8] sm:$0xf]
    %v115 = vld [vmem:[#allocation3 + $0xcc] sm:$0xf]
    %v116 = vld [vmem:[#allocation3 + $0xd0] sm:$0xf]
    %v117 = vld [vmem:[#allocation3 + $0xd4] sm:$0xf]
    %v118 = vld [vmem:[#allocation3 + $0xd8] sm:$0xf]
    %v119 = vld [vmem:[#allocation3 + $0xdc] sm:$0xf]
    %v120 = vld [vmem:[#allocation3 + $0xe0] sm:$0xf]
    %v121 = vld [vmem:[#allocation3 + $0xe4] sm:$0xf]
    %v122 = vld [vmem:[#allocation3 + $0xe8] sm:$0xf]
    %v123 = vld [vmem:[#allocation3 + $0xec] sm:$0xf]
    %v124 = vld [vmem:[#allocation3 + $0xf0] sm:$0xf]
    %v125 = vld [vmem:[#allocation3 + $0xf4] sm:$0xf]
    %v126 = vld [vmem:[#allocation3 + $0xf8] sm:$0xf]
    %v127 = vld [vmem:[#allocation3 + $0xfc] sm:$0xf]
    %v128 = vpack.c.bf16 %v63, %v63
    %v129 = vld [vmem:[#allocation3 + $0x100] sm:$0xf]
    %v130 = vld [vmem:[#allocation3 + $0x104] sm:$0xf]
    %v131 = vld [vmem:[#allocation3 + $0x108] sm:$0xf]
    %v132 = vld [vmem:[#allocation3 + $0x10c] sm:$0xf]
    %v133 = vld [vmem:[#allocation3 + $0x110] sm:$0xf]
    %v134 = vld [vmem:[#allocation3 + $0x114] sm:$0xf]
    %v135 = vld [vmem:[#allocation3 + $0x118] sm:$0xf]
    %v136 = vld [vmem:[#allocation3 + $0x11c] sm:$0xf]
    %v137 = vld [vmem:[#allocation3 + $0x120] sm:$0xf]
    %v138 = vld [vmem:[#allocation3 + $0x124] sm:$0xf]
    %v139 = vld [vmem:[#allocation3 + $0x128] sm:$0xf]
    %v140 = vld [vmem:[#allocation3 + $0x12c] sm:$0xf]
    %v141 = vld [vmem:[#allocation3 + $0x130] sm:$0xf]
    %v142 = vld [vmem:[#allocation3 + $0x134] sm:$0xf]
    %v143 = vld [vmem:[#allocation3 + $0x138] sm:$0xf]
    %v144 = vld [vmem:[#allocation3 + $0x13c] sm:$0xf]
    %v161 = vunpack.c.l.b16 %v129
    %v162 = vunpack.c.l.b16 %v130
    %v163 = vunpack.c.l.b16 %v131
    %v164 = vunpack.c.l.b16 %v132
    %v165 = vunpack.c.l.b16 %v133
    %v166 = vunpack.c.l.b16 %v134
    %v167 = vunpack.c.l.b16 %v135
    %v168 = vunpack.c.l.b16 %v136
    %v169 = vunpack.c.l.b16 %v137
    %v170 = vunpack.c.l.b16 %v138
    %v171 = vunpack.c.l.b16 %v139
    %v172 = vunpack.c.l.b16 %v140
    %v173 = vunpack.c.l.b16 %v141
    %v174 = vunpack.c.l.b16 %v142
    %v175 = vunpack.c.l.b16 %v143
    %v176 = vunpack.c.l.b16 %v144
    %v177 = vpack.c.b16 %v162, %v161
    %v178 = vpack.c.b16 %v164, %v163
    %v179 = vpack.c.b16 %v166, %v165
    %v180 = vpack.c.b16 %v168, %v167
    %v181 = vpack.c.b16 %v170, %v169
    %v182 = vpack.c.b16 %v172, %v171
    %v183 = vpack.c.b16 %v174, %v173
    %v184 = vpack.c.b16 %v176, %v175
    %193 = vmatprep.subr.bf16.mxu0 0
    %194 = vmatpush1.bf16.msra.mxu0 %v177
    %195 = vmatprep.subr.bf16.mxu0 0
    %196 = vmatpush1.bf16.msra.mxu0 %v178
    %197 = vmatprep.subr.bf16.mxu0 0
    %198 = vmatpush1.bf16.msra.mxu0 %v179
    %199 = vmatprep.subr.bf16.mxu0 0
    %200 = vmatpush1.bf16.msra.mxu0 %v180
    %201 = vmatprep.subr.bf16.mxu0 0
    %202 = vmatpush1.bf16.msra.mxu0 %v181
    %203 = vmatprep.subr.bf16.mxu0 0
    %204 = vmatpush1.bf16.msra.mxu0 %v182
    %205 = vmatprep.subr.bf16.mxu0 0
    %206 = vmatpush1.bf16.msra.mxu0 %v183
    %207 = vmatprep.subr.bf16.mxu0 0
    %208 = vmatpush1.bf16.msra.mxu0 %v184
    %209 = vmatprep.subr.bf16.mxu0 0
    %210 = vmatpush1.bf16.msra.mxu0 0
    %211 = vmatprep.subr.bf16.mxu0 0
    %212 = vmatpush1.bf16.msra.mxu0 0
    %213 = vmatprep.subr.bf16.mxu0 0
    %214 = vmatpush1.bf16.msra.mxu0 0
    %215 = vmatprep.subr.bf16.mxu0 0
    %216 = vmatpush1.bf16.msra.mxu0 0
    %217 = vmatprep.subr.bf16.mxu0 0
    %218 = vmatpush1.bf16.msra.mxu0 0
    %219 = vmatprep.subr.bf16.mxu0 0
    %220 = vmatpush1.bf16.msra.mxu0 0
    %221 = vmatprep.subr.bf16.mxu0 0
    %222 = vmatpush1.bf16.msra.mxu0 0
    %223 = vmatprep.subr.bf16.mxu0 0
    %224 = vmatpush1.bf16.msra.mxu0 0
    %225 = vmatprep.mubr.bf16.mxu0 0
    %226 = vmatmul.mubr.bf16.gmra.mrb[0].mxu0 %v128
    %v227 = vpop.f32.mrb[0].mxu0
    %v228 = vadd.f32 0.0, %v227
    %v229 = vpop.f32.mrb[0].mxu0
    %v230 = vpop.f32.mrb[0].mxu0
    %v231 = vpop.f32.mrb[0].mxu0
    %232 = vdwg.mxu0
    %v235 = vunpack.c.l.b16 %v61
    %v236 = vunpack.c.h.b16 %v61
    %v237 = vunpack.c.l.b16 %v62
    %v238 = vunpack.c.h.b16 %v62
    %v239 = vpack.c.b16 %v235, %v235
    %v240 = vpack.c.b16 %v236, %v236
    %v241 = vpack.c.b16 %v237, %v237
    %v242 = vpack.c.b16 %v238, %v238
    %v311 = vunpack.c.l.b16 %v64
    %v312 = vunpack.c.l.b16 %v65
    %v313 = vunpack.c.l.b16 %v66
    %v314 = vunpack.c.l.b16 %v67
    %v315 = vunpack.c.l.b16 %v68
    %v316 = vunpack.c.l.b16 %v69
    %v317 = vunpack.c.l.b16 %v70
    %v318 = vunpack.c.l.b16 %v71
    %v319 = vunpack.c.l.b16 %v72
    %v320 = vunpack.c.l.b16 %v73
    %v321 = vunpack.c.l.b16 %v74
    %v322 = vunpack.c.l.b16 %v75
    %v323 = vunpack.c.l.b16 %v76
    %v324 = vunpack.c.l.b16 %v77
    %v325 = vunpack.c.l.b16 %v78
    %v326 = vunpack.c.l.b16 %v79
    %v327 = vunpack.c.l.b16 %v80
    %v328 = vunpack.c.l.b16 %v81
    %v329 = vunpack.c.l.b16 %v82
    %v330 = vunpack.c.l.b16 %v83
    %v331 = vunpack.c.l.b16 %v84
    %v332 = vunpack.c.l.b16 %v85
    %v333 = vunpack.c.l.b16 %v86
    %v334 = vunpack.c.l.b16 %v87
    %v335 = vunpack.c.l.b16 %v88
    %v336 = vunpack.c.l.b16 %v89
    %v337 = vunpack.c.l.b16 %v90
    %v338 = vunpack.c.l.b16 %v91
    %v339 = vunpack.c.l.b16 %v92
    %v340 = vunpack.c.l.b16 %v93
    %v341 = vunpack.c.l.b16 %v94
    %v342 = vunpack.c.l.b16 %v95
    %v343 = vunpack.c.l.b16 %v96
    %v344 = vunpack.c.l.b16 %v97
    %v345 = vunpack.c.l.b16 %v98
    %v346 = vunpack.c.l.b16 %v99
    %v347 = vunpack.c.l.b16 %v100
    %v348 = vunpack.c.l.b16 %v101
    %v349 = vunpack.c.l.b16 %v102
    %v350 = vunpack.c.l.b16 %v103
    %v351 = vunpack.c.l.b16 %v104
    %v352 = vunpack.c.l.b16 %v105
    %v353 = vunpack.c.l.b16 %v106
    %v354 = vunpack.c.l.b16 %v107
    %v355 = vunpack.c.l.b16 %v108
    %v356 = vunpack.c.l.b16 %v109
    %v357 = vunpack.c.l.b16 %v110
    %v358 = vunpack.c.l.b16 %v111
    %v359 = vunpack.c.l.b16 %v112
    %v360 = vunpack.c.l.b16 %v113
    %v361 = vunpack.c.l.b16 %v114
    %v362 = vunpack.c.l.b16 %v115
    %v363 = vunpack.c.l.b16 %v116
    %v364 = vunpack.c.l.b16 %v117
    %v365 = vunpack.c.l.b16 %v118
    %v366 = vunpack.c.l.b16 %v119
    %v367 = vunpack.c.l.b16 %v120
    %v368 = vunpack.c.l.b16 %v121
    %v369 = vunpack.c.l.b16 %v122
    %v370 = vunpack.c.l.b16 %v123
    %v371 = vunpack.c.l.b16 %v124
    %v372 = vunpack.c.l.b16 %v125
    %v373 = vunpack.c.l.b16 %v126
    %v374 = vunpack.c.l.b16 %v127
    %v375 = vpack.c.b16 %v312, %v311
    %v376 = vpack.c.b16 %v314, %v313
    %v377 = vpack.c.b16 %v316, %v315
    %v378 = vpack.c.b16 %v318, %v317
    %v379 = vpack.c.b16 %v320, %v319
    %v380 = vpack.c.b16 %v322, %v321
    %v381 = vpack.c.b16 %v324, %v323
    %v382 = vpack.c.b16 %v326, %v325
    %v383 = vpack.c.b16 %v328, %v327
    %v384 = vpack.c.b16 %v330, %v329
    %v385 = vpack.c.b16 %v332, %v331
    %v386 = vpack.c.b16 %v334, %v333
    %v387 = vpack.c.b16 %v336, %v335
    %v388 = vpack.c.b16 %v338, %v337
    %v389 = vpack.c.b16 %v340, %v339
    %v390 = vpack.c.b16 %v342, %v341
    %v391 = vpack.c.b16 %v344, %v343
    %v392 = vpack.c.b16 %v346, %v345
    %v393 = vpack.c.b16 %v348, %v347
    %v394 = vpack.c.b16 %v350, %v349
    %v395 = vpack.c.b16 %v352, %v351
    %v396 = vpack.c.b16 %v354, %v353
    %v397 = vpack.c.b16 %v356, %v355
    %v398 = vpack.c.b16 %v358, %v357
    %v399 = vpack.c.b16 %v360, %v359
    %v400 = vpack.c.b16 %v362, %v361
    %v401 = vpack.c.b16 %v364, %v363
    %v402 = vpack.c.b16 %v366, %v365
    %v403 = vpack.c.b16 %v368, %v367
    %v404 = vpack.c.b16 %v370, %v369
    %v405 = vpack.c.b16 %v372, %v371
    %v406 = vpack.c.b16 %v374, %v373
    %439 = vmatprep.subr.bf16.mxu0 0
    %440 = vmatpush1.bf16.msra.mxu0 %v375
    %441 = vmatprep.subr.bf16.mxu0 0
    %442 = vmatpush1.bf16.msra.mxu0 %v376
    %443 = vmatprep.subr.bf16.mxu0 0
    %444 = vmatpush1.bf16.msra.mxu0 %v377
    %445 = vmatprep.subr.bf16.mxu0 0
    %446 = vmatpush1.bf16.msra.mxu0 %v378
    %447 = vmatprep.subr.bf16.mxu0 0
    %448 = vmatpush1.bf16.msra.mxu0 %v379
    %449 = vmatprep.subr.bf16.mxu0 0
    %450 = vmatpush1.bf16.msra.mxu0 %v380
    %451 = vmatprep.subr.bf16.mxu0 0
    %452 = vmatpush1.bf16.msra.mxu0 %v381
    %453 = vmatprep.subr.bf16.mxu0 0
    %454 = vmatpush1.bf16.msra.mxu0 %v382
    %455 = vmatprep.subr.bf16.mxu0 0
    %456 = vmatpush1.bf16.msra.mxu0 %v383
    %457 = vmatprep.subr.bf16.mxu0 0
    %458 = vmatpush1.bf16.msra.mxu0 %v384
    %459 = vmatprep.subr.bf16.mxu0 0
    %460 = vmatpush1.bf16.msra.mxu0 %v385
    %461 = vmatprep.subr.bf16.mxu0 0
    %462 = vmatpush1.bf16.msra.mxu0 %v386
    %463 = vmatprep.subr.bf16.mxu0 0
    %464 = vmatpush1.bf16.msra.mxu0 %v387
    %465 = vmatprep.subr.bf16.mxu0 0
    %466 = vmatpush1.bf16.msra.mxu0 %v388
    %467 = vmatprep.subr.bf16.mxu0 0
    %468 = vmatpush1.bf16.msra.mxu0 %v389
    %469 = vmatprep.subr.bf16.mxu0 0
    %470 = vmatpush1.bf16.msra.mxu0 %v390
    %471 = vmatprep.mubr.bf16.mxu0 %v240
    %472 = vmatmul.mubr.bf16.gmra.mrb[0].mxu0 %v239
    %v473 = vpop.f32.mrb[0].mxu0
    %v474 = vadd.f32 %v228, %v473
    %v475 = vpop.f32.mrb[0].mxu0
    %v476 = vpop.f32.mrb[0].mxu0
    %v477 = vpop.f32.mrb[0].mxu0
    %478 = vdwg.mxu0
    %479 = vmatprep.subr.bf16.mxu0 0
    %480 = vmatpush1.bf16.msra.mxu0 %v391
    %481 = vmatprep.subr.bf16.mxu0 0
    %482 = vmatpush1.bf16.msra.mxu0 %v392
    %483 = vmatprep.subr.bf16.mxu0 0
    %484 = vmatpush1.bf16.msra.mxu0 %v393
    %485 = vmatprep.subr.bf16.mxu0 0
    %486 = vmatpush1.bf16.msra.mxu0 %v394
    %487 = vmatprep.subr.bf16.mxu0 0
    %488 = vmatpush1.bf16.msra.mxu0 %v395
    %489 = vmatprep.subr.bf16.mxu0 0
    %490 = vmatpush1.bf16.msra.mxu0 %v396
    %491 = vmatprep.subr.bf16.mxu0 0
    %492 = vmatpush1.bf16.msra.mxu0 %v397
    %493 = vmatprep.subr.bf16.mxu0 0
    %494 = vmatpush1.bf16.msra.mxu0 %v398
    %495 = vmatprep.subr.bf16.mxu0 0
    %496 = vmatpush1.bf16.msra.mxu0 %v399
    %497 = vmatprep.subr.bf16.mxu0 0
    %498 = vmatpush1.bf16.msra.mxu0 %v400
    %499 = vmatprep.subr.bf16.mxu0 0
    %500 = vmatpush1.bf16.msra.mxu0 %v401
    %501 = vmatprep.subr.bf16.mxu0 0
    %502 = vmatpush1.bf16.msra.mxu0 %v402
    %503 = vmatprep.subr.bf16.mxu0 0
    %504 = vmatpush1.bf16.msra.mxu0 %v403
    %505 = vmatprep.subr.bf16.mxu0 0
    %506 = vmatpush1.bf16.msra.mxu0 %v404
    %507 = vmatprep.subr.bf16.mxu0 0
    %508 = vmatpush1.bf16.msra.mxu0 %v405
    %509 = vmatprep.subr.bf16.mxu0 0
    %510 = vmatpush1.bf16.msra.mxu0 %v406
    %511 = vmatprep.mubr.bf16.mxu0 %v242
    %512 = vmatmul.mubr.bf16.gmra.mrb[0].mxu0 %v241
    %v513 = vpop.f32.mrb[0].mxu0
    %v514 = vadd.f32 %v474, %v513
    %v515 = vpop.f32.mrb[0].mxu0
    %v516 = vpop.f32.mrb[0].mxu0
    %v517 = vpop.f32.mrb[0].mxu0
    %518 = vdwg.mxu0
    %v519 = vld [vmem:[%s3] sm:$0x1]
    %v521 = vlaneseq
    %v522 = vshrl.u32 %v521, 7
    %v523 = vsub.s32 0, %v522
    %v524 = vrot.slane %v519, %v523
    %v526 = vadd.f32 %v514, %v524
    %v527 = vmax.f32 %v526, 0.0
    %528 = vst [vmem:[#allocation2] sm:$0xff] %v527
    %v529 = vpack.c.bf16 %v527, %v527
    %v530 = vld [vmem:[#allocation6] sm:$0xf]
    %v531 = vld [vmem:[#allocation6 + $0x4] sm:$0xf]
    %v532 = vld [vmem:[#allocation6 + $0x8] sm:$0xf]
    %v533 = vld [vmem:[#allocation6 + $0xc] sm:$0xf]
    %v534 = vld [vmem:[#allocation6 + $0x10] sm:$0xf]
    %v535 = vld [vmem:[#allocation6 + $0x14] sm:$0xf]
    %v536 = vld [vmem:[#allocation6 + $0x18] sm:$0xf]
    %v537 = vld [vmem:[#allocation6 + $0x1c] sm:$0xf]
    %v538 = vld [vmem:[#allocation6 + $0x20] sm:$0xf]
    %v539 = vld [vmem:[#allocation6 + $0x24] sm:$0xf]
    %v540 = vld [vmem:[#allocation6 + $0x28] sm:$0xf]
    %v541 = vld [vmem:[#allocation6 + $0x2c] sm:$0xf]
    %v542 = vld [vmem:[#allocation6 + $0x30] sm:$0xf]
    %v543 = vld [vmem:[#allocation6 + $0x34] sm:$0xf]
    %v544 = vld [vmem:[#allocation6 + $0x38] sm:$0xf]
    %v545 = vld [vmem:[#allocation6 + $0x3c] sm:$0xf]
    %v546 = vld [vmem:[%s5] sm:$0x1]
    %v548 = vlaneseq
    %v549 = vshrl.u32 %v548, 7
    %v550 = vsub.s32 0, %v549
    %v551 = vrot.slane %v546, %v550
    %v569 = vunpack.c.l.b16 %v530
    %v570 = vunpack.c.l.b16 %v531
    %v571 = vunpack.c.l.b16 %v532
    %v572 = vunpack.c.l.b16 %v533
    %v573 = vunpack.c.l.b16 %v534
    %v574 = vunpack.c.l.b16 %v535
    %v575 = vunpack.c.l.b16 %v536
    %v576 = vunpack.c.l.b16 %v537
    %v577 = vunpack.c.l.b16 %v538
    %v578 = vunpack.c.l.b16 %v539
    %v579 = vunpack.c.l.b16 %v540
    %v580 = vunpack.c.l.b16 %v541
    %v581 = vunpack.c.l.b16 %v542
    %v582 = vunpack.c.l.b16 %v543
    %v583 = vunpack.c.l.b16 %v544
    %v584 = vunpack.c.l.b16 %v545
    %v585 = vpack.c.b16 %v570, %v569
    %v586 = vpack.c.b16 %v572, %v571
    %v587 = vpack.c.b16 %v574, %v573
    %v588 = vpack.c.b16 %v576, %v575
    %v589 = vpack.c.b16 %v578, %v577
    %v590 = vpack.c.b16 %v580, %v579
    %v591 = vpack.c.b16 %v582, %v581
    %v592 = vpack.c.b16 %v584, %v583
    %601 = vmatprep.subr.bf16.mxu0 0
    %602 = vmatpush1.bf16.msra.mxu0 %v585
    %603 = vmatprep.subr.bf16.mxu0 0
    %604 = vmatpush1.bf16.msra.mxu0 %v586
    %605 = vmatprep.subr.bf16.mxu0 0
    %606 = vmatpush1.bf16.msra.mxu0 %v587
    %607 = vmatprep.subr.bf16.mxu0 0
    %608 = vmatpush1.bf16.msra.mxu0 %v588
    %609 = vmatprep.subr.bf16.mxu0 0
    %610 = vmatpush1.bf16.msra.mxu0 %v589
    %611 = vmatprep.subr.bf16.mxu0 0
    %612 = vmatpush1.bf16.msra.mxu0 %v590
    %613 = vmatprep.subr.bf16.mxu0 0
    %614 = vmatpush1.bf16.msra.mxu0 %v591
    %615 = vmatprep.subr.bf16.mxu0 0
    %616 = vmatpush1.bf16.msra.mxu0 %v592
    %617 = vmatprep.subr.bf16.mxu0 0
    %618 = vmatpush1.bf16.msra.mxu0 0
    %619 = vmatprep.subr.bf16.mxu0 0
    %620 = vmatpush1.bf16.msra.mxu0 0
    %621 = vmatprep.subr.bf16.mxu0 0
    %622 = vmatpush1.bf16.msra.mxu0 0
    %623 = vmatprep.subr.bf16.mxu0 0
    %624 = vmatpush1.bf16.msra.mxu0 0
    %625 = vmatprep.subr.bf16.mxu0 0
    %626 = vmatpush1.bf16.msra.mxu0 0
    %627 = vmatprep.subr.bf16.mxu0 0
    %628 = vmatpush1.bf16.msra.mxu0 0
    %629 = vmatprep.subr.bf16.mxu0 0
    %630 = vmatpush1.bf16.msra.mxu0 0
    %631 = vmatprep.subr.bf16.mxu0 0
    %632 = vmatpush1.bf16.msra.mxu0 0
    %633 = vmatprep.mubr.bf16.mxu0 0
    %634 = vmatmul.mubr.bf16.gmra.mrb[0].mxu0 %v529
    %v635 = vpop.f32.mrb[0].mxu0
    %v636 = vadd.f32 %v551, %v635
    %v637 = vpop.f32.mrb[0].mxu0
    %v638 = vpop.f32.mrb[0].mxu0
    %v639 = vpop.f32.mrb[0].mxu0
    %640 = vdwg.mxu0
    %vm641 = vcmask 15360
    %642 = vst.msk [vmem:[%s6] sm:$0xff] %vm641, %v636
    // Predicated region
    $region38: #{rnn_sequence_forward.1} parent=1 // pred_check
      %p643 = pneg %p55
    $region39: #{rnn_sequence_forward.1} parent=1 // pred_check_branch
      %645 = sbr.rel (%p643) target = $region41
    $region40: #{rnn_sequence_forward.1} parent=1 // pred_region
      %646 = vst [vmem:[#allocation8] sm:$0xff] %v527
    $region41: #{rnn_sequence_forward.1} parent=1 // pred_fallthru
      _
    // Predicated region
    $region42: #{rnn_sequence_forward.1} parent=1 // pred_check
      _
    $region43: #{rnn_sequence_forward.1} parent=1 // pred_check_branch
      %648 = sbr.rel (0) target = $region45
    $region44: #{rnn_sequence_forward.1} parent=1 // pred_region
      _
    $region45: #{rnn_sequence_forward.1} parent=1 // pred_fallthru
      _
    // Predicated region
    $region46: #{rnn_sequence_forward.1} parent=1 // pred_check
      _
    $region47: #{rnn_sequence_forward.1} parent=1 // pred_check_branch
      %650 = sbr.rel (0) target = $region49
    $region48: #{rnn_sequence_forward.1} parent=1 // pred_region
      %s652 = ssub.s32 128, 128
      %653 = vsyncadd [#allocation5], %s652
      %s655 = sshll.u32 [#allocation8], 4
      %s656 = int_to_ptr.vmem [resolvable:$true] %s655
      %658 = dma.vmem_to_hbm [thread:$0]  %s656, 128, %s7, [#allocation5]
    $region49: #{rnn_sequence_forward.1} parent=1 // pred_fallthru
      _
    // Predicated region
    $region50: #{rnn_sequence_forward.1} parent=1 // pred_check
      _
    $region51: #{rnn_sequence_forward.1} parent=1 // pred_check_branch
      %660 = sbr.rel (0) target = $region53
    $region52: #{rnn_sequence_forward.1} parent=1 // pred_region
      _
    $region53: #{rnn_sequence_forward.1} parent=1 // pred_fallthru
      _
    // Predicated region
    $region54: #{rnn_sequence_forward.1} parent=1 // pred_check
      _
    $region55: #{rnn_sequence_forward.1} parent=1 // pred_check_branch
      %662 = sbr.rel (0) target = $region57
    $region56: #{rnn_sequence_forward.1} parent=1 // pred_region
      %663 = dma.done [#allocation5], 128
    $region57: #{rnn_sequence_forward.1} parent=1 // pred_fallthru
      _
    %664 = vsyncpa [#allocation4], 1
    %665 = vsyncpa [#allocation7], 1
    %666 = vsyncpa [#allocation5], 1

</llo_original>
